<compile_context>
chip_gen: v6e
topology: v6e:2x2x1
jax: 0.10.0
libtpu: 0.0.40
codegen_flags: <defaults>
</compile_context>

<pallas_src>
import math

import jax
import jax.numpy as jnp
from jax.experimental import pallas as pl
from jax.experimental.pallas import tpu as pltpu

_LOG_CLIP_MIN = math.log(0.005)
_VMEM_LIMIT = 32 * 1024 * 1024          # scoped VMEM cap: safe on v5e/v6e/v7x
_SEG_BUDGET_BYTES = 18 << 20            # working-set target for the main kernel


# ----------------------------------------------------------------------------
# Main kernel: per-sample class softmax + per-(n, c) partial sums for dice/wCE
# ----------------------------------------------------------------------------
def _seg_stats_kernel(lab_ref, logits_ref, out_ref):
    """For one (sample, HW-chunk) tile, writes per-class lane-rows (sum over the
    sublane axis only) of:
       [0] softmax * gt   (dice intersection)
       [1] gt             (dice ground_o)
       [2] softmax        (dice pred_o)
       [3] gt * log(clip(softmax, .005, 1))   (weighted-CE partial)"""
    n_cls = logits_ref.shape[1]
    lab = lab_ref[0, 0]                                        # (R, 128) int32
    x = [logits_ref[0, k].astype(jnp.float32) for k in range(n_cls)]

    # class-axis softmax as an elementwise tree over dense (R, 128) planes
    m = x[0]
    for k in range(1, n_cls):
        m = jnp.maximum(m, x[k])
    z = [xk - m for xk in x]
    e = [jnp.exp(zk) for zk in z]
    s = e[0]
    for k in range(1, n_cls):
        s = s + e[k]
    inv_s = pl.reciprocal(s, approx=True)                      # EUP slot (free)
    log_s = jnp.log(s)

    zero = jnp.zeros_like(s)
    one = jnp.ones_like(s)
    for k in range(n_cls):
        p_k = e[k] * inv_s
        logp_k = jnp.maximum(z[k] - log_s, _LOG_CLIP_MIN)      # log(clip(p,.005,1))
        mask = lab == k                                        # bool, no f32 one-hot
        inter_r = jnp.sum(jnp.where(mask, p_k, zero), axis=0, keepdims=True)
        ground_r = jnp.sum(jnp.where(mask, one, zero), axis=0, keepdims=True)
        pred_r = jnp.sum(p_k, axis=0, keepdims=True)
        celog_r = jnp.sum(jnp.where(mask, logp_k, zero), axis=0, keepdims=True)
        out_ref[0, 0, k] = jnp.concatenate(
            [inter_r, ground_r, pred_r, celog_r], axis=0)      # (4, 128) lane-dense


def _pick_rows(total_rows, n_cls, elem_bytes):
    """Largest multiple-of-8 divisor of total_rows whose working set fits the
    VMEM budget (double-buffered inputs + live f32 compute intermediates)."""
    per_row = (2 * (n_cls + 1) * 128 * elem_bytes            # 2x buffered inputs
               + (2 * n_cls + 6) * 128 * 4)                   # live f32 planes
    max_rows = max(8, _SEG_BUDGET_BYTES // per_row)
    if total_rows <= max_rows or total_rows % 8 != 0:
        return total_rows
    r = min(total_rows, (max_rows // 8) * 8)
    while r > 8 and total_rows % r != 0:
        r -= 8
    return r


def _seg_stats(logits, labels_t):
    n, c, h, w = logits.shape
    hw = h * w
    total_rows = hw // 128
    rows = _pick_rows(total_rows, c, jnp.dtype(logits.dtype).itemsize)
    chunks = total_rows // rows
    # v7x has 2 TensorCores: make sure the parallel grid has >= 2 steps.
    if n * chunks < 2 and rows % 16 == 0:
        rows //= 2
        chunks = total_rows // rows

    lf = logits.reshape(n, c, total_rows, 128)       # native dtype (no HBM upcast)
    lab = labels_t.reshape(n, 1, total_rows, 128)    # int32 transposed labels

    partial = pl.pallas_call(
        _seg_stats_kernel,
        out_shape=jax.ShapeDtypeStruct((n, chunks, c, 4, 128), jnp.float32),
        grid=(n, chunks),
        in_specs=[pl.BlockSpec((1, 1, rows, 128), lambda i, j: (i, 0, j, 0)),
                  pl.BlockSpec((1, c, rows, 128), lambda i, j: (i, 0, j, 0))],
        out_specs=pl.BlockSpec((1, 1, c, 4, 128), lambda i, j: (i, j, 0, 0, 0)),
        compiler_params=pltpu.CompilerParams(
            dimension_semantics=("parallel", "parallel"),
            vmem_limit_bytes=_VMEM_LIMIT),
    )(lab, lf)
    return jnp.sum(partial, axis=(1, 4))             # (N, C, 4) tiny XLA reduce


# ----------------------------------------------------------------------------
# Generic tiled reductions for the cycle-L1 and LSGAN terms
# ----------------------------------------------------------------------------
def _l1_partial_kernel(x_ref, y_ref, o_ref):
    d = jnp.abs(x_ref[0].astype(jnp.float32) - y_ref[0].astype(jnp.float32))
    o_ref[0] = jnp.sum(d, axis=0, keepdims=True)          # (1, 128)


def _sqerr_partial_kernel(x_ref, o_ref):
    d = x_ref[0].astype(jnp.float32) - 1.0
    o_ref[0] = jnp.sum(d * d, axis=0, keepdims=True)       # (1, 128)


def _tiled_partial_sum(kernel_body, arrays, pad_values, max_rows=2048):
    """sum_x f(x...) over arbitrarily sized tensors via (chunks, rows, 128)
    dense tiles; per-chunk (1,128) partial rows are summed in XLA."""
    n = int(arrays[0].size)
    rows_needed = max(1, -(-n // 128))
    rows = min(max_rows, rows_needed)
    chunks = -(-rows_needed // rows)
    total = chunks * rows * 128

    tiles = []
    for a, pv in zip(arrays, pad_values):
        flat = jnp.ravel(a)
        if total > n:
            flat = jnp.concatenate(
                [flat, jnp.full((total - n,), pv, flat.dtype)])
        tiles.append(flat.reshape(chunks, rows, 128))

    partial = pl.pallas_call(
        kernel_body,
        out_shape=jax.ShapeDtypeStruct((chunks, 1, 128), jnp.float32),
        grid=(chunks,),
        in_specs=[pl.BlockSpec((1, rows, 128), lambda i: (i, 0, 0))
                  for _ in tiles],
        out_specs=pl.BlockSpec((1, 1, 128), lambda i: (i, 0, 0)),
        compiler_params=pltpu.CompilerParams(
            dimension_semantics=("parallel",),
            vmem_limit_bytes=_VMEM_LIMIT),
    )(*tiles)
    return jnp.sum(partial)


# ----------------------------------------------------------------------------
# Forward pass == SegmentationLossTarget.forward
# ----------------------------------------------------------------------------
def segmentation_loss_target(logits, gt, model_params, prob_fake_x_is_real,
                             input_a, input_b, cycle_input_a, cycle_input_b,
                             loss_f_weight_value, prob_fea_b_is_real,
                             prob_fake_a_aux_is_real, lr_a=0.01, lr_b=0.01):
    n, c, h, w = logits.shape
    # PyTorch: one_hot(gt.squeeze(1)).permute(0,3,2,1) compares logits at (h,w)
    # against the label at (w,h) -> requires H == W, same as the original module.
    assert h == w, "SegmentationLossTarget's permute(0,3,2,1) requires H == W"
    assert (h * w) % 128 == 0, "H*W must be a multiple of 128 for the TPU kernel"

    labels_t = jnp.transpose(gt[:, 0].astype(jnp.int32), (0, 2, 1))     # (N,W,H)
    # TODO(synk): fold this label transpose into the label BlockSpec (2-D tiles +
    # in-kernel XLU transpose) to drop the extra N*H*W int32 HBM pass on v5e.

    stats = _seg_stats(logits, labels_t)                                # (N,C,4)
    inter, ground, pred, celog = (stats[..., 0], stats[..., 1],
                                  stats[..., 2], stats[..., 3])

    # DiceLoss(softmax=True)
    # TODO(synk): DiceLoss body not provided with the source module; MONAI
    # defaults assumed (smooth_nr=smooth_dr=1e-5, include_background,
    # per-(sample,class) dice, mean reduction).
    smooth = 1e-5
    dice_per = 1.0 - (2.0 * inter + smooth) / (ground + pred + smooth)
    dice_loss = jnp.mean(dice_per)

    # SoftmaxWeightedLoss
    gt_class_sum = jnp.sum(ground, axis=0)                              # (C,)
    gt_total = jnp.sum(ground)
    weighted = 1.0 - gt_class_sum / gt_total
    ce_loss = -jnp.sum(weighted * jnp.sum(celog, axis=0)) / (n * h * w)

    # Parameter L2 in plain XLA (no concatenated model copy through HBM/VMEM).
    l2_loss = 0.0
    for p in model_params:
        l2_loss = l2_loss + 1e-4 * jnp.sum(jnp.square(p.astype(jnp.float32)))

    # Tiled Pallas reductions for the generator / LSGAN terms.
    s_ca = _tiled_partial_sum(_l1_partial_kernel, (input_a, cycle_input_a), (0.0, 0.0))
    s_cb = _tiled_partial_sum(_l1_partial_kernel, (input_b, cycle_input_b), (0.0, 0.0))
    s_fx = _tiled_partial_sum(_sqerr_partial_kernel, (prob_fake_x_is_real,), (1.0,))
    s_fb = _tiled_partial_sum(_sqerr_partial_kernel, (prob_fea_b_is_real,), (1.0,))
    s_fa = _tiled_partial_sum(_sqerr_partial_kernel, (prob_fake_a_aux_is_real,), (1.0,))

    gen_loss = (lr_a * s_ca / input_a.size + lr_b * s_cb / input_b.size
                + 0.5 * s_fx / prob_fake_x_is_real.size)
    seg_loss_source = dice_loss + ce_loss + l2_loss + 0.1 * gen_loss

    ls_gan_loss_f = 0.5 * s_fb / prob_fea_b_is_real.size
    lsgan_loss_a_aux = 0.5 * s_fa / prob_fake_a_aux_is_real.size
    extra_loss = loss_f_weight_value * ls_gan_loss_f + 0.1 * lsgan_loss_a_aux
    return seg_loss_source + extra_loss


# ----------------------------------------------------------------------------
# Pure-JAX reference (mirrors the PyTorch graph) for a correctness check
# ----------------------------------------------------------------------------
def _reference(logits, gt, model_params, pfx, ia, ib, cia, cib, lfw, pfb, pfa,
               lr_a=0.01, lr_b=0.01):
    n, c, h, w = logits.shape
    oh = jax.nn.one_hot(gt[:, 0].astype(jnp.int32), c, dtype=jnp.float32)
    gt_oh = jnp.transpose(oh, (0, 3, 2, 1))
    p = jax.nn.softmax(logits.astype(jnp.float32), axis=1)
    inter = jnp.sum(gt_oh * p, axis=(2, 3))
    ground = jnp.sum(gt_oh, axis=(2, 3))
    pred = jnp.sum(p, axis=(2, 3))
    dice = jnp.mean(1.0 - (2.0 * inter + 1e-5) / (ground + pred + 1e-5))
    raw = jnp.zeros((n, h, w), jnp.float32)
    for i in range(c):
        wgt = 1.0 - jnp.sum(gt_oh[:, i]) / jnp.sum(gt_oh)
        raw = raw - wgt * gt_oh[:, i] * jnp.log(jnp.clip(p[:, i], 0.005, 1.0))
    ce = jnp.mean(raw)
    l2 = sum(1e-4 * jnp.sum(pp.astype(jnp.float32) ** 2) for pp in model_params)
    gen = (lr_a * jnp.mean(jnp.abs(ia - cia)) + lr_b * jnp.mean(jnp.abs(ib - cib))
           + 0.5 * jnp.mean((pfx - 1.0) ** 2))
    seg = dice + ce + l2 + 0.1 * gen
    return seg + lfw * 0.5 * jnp.mean((pfb - 1.0) ** 2) + 0.1 * 0.5 * jnp.mean((pfa - 1.0) ** 2)


if __name__ == "__main__":
    key = jax.random.PRNGKey(0)
    ks = jax.random.split(key, 12)
    N, C, H, W = 2, 4, 16, 16

    logits = jax.random.normal(ks[0], (N, C, H, W), jnp.float32)
    gt = jax.random.randint(ks[1], (N, 1, H, W), 0, C).astype(jnp.int32)
    prob_fake_x = jax.random.normal(ks[2], (N, 1, 8, 8), jnp.float32)
    input_a = jax.random.normal(ks[3], (N, 3, H, W), jnp.float32)
    input_b = jax.random.normal(ks[4], (N, 3, H, W), jnp.float32)
    cycle_input_a = jax.random.normal(ks[5], (N, 3, H, W), jnp.float32)
    cycle_input_b = jax.random.normal(ks[6], (N, 3, H, W), jnp.float32)
    prob_fea_b = jax.random.normal(ks[7], (N, 1, 8, 8), jnp.float32)
    prob_fake_a_aux = jax.random.normal(ks[8], (N, 1, 8, 8), jnp.float32)
    # Deterministic synthetic "model" parameters (only L2-penalized by the loss).
    model_params = [
        0.1 * jax.random.normal(ks[9], (4, 3, 3, 3), jnp.float32),
        0.1 * jax.random.normal(ks[10], (4,), jnp.float32),
        0.1 * jax.random.normal(ks[11], (4, 4, 3, 3), jnp.float32),
    ]
    loss_f_weight_value = 0.1

    loss = segmentation_loss_target(
        logits, gt, model_params, prob_fake_x,
        input_a, input_b, cycle_input_a, cycle_input_b,
        loss_f_weight_value, prob_fea_b, prob_fake_a_aux)
    loss = jax.block_until_ready(loss)

    ref = _reference(
        logits, gt, model_params, prob_fake_x,
        input_a, input_b, cycle_input_a, cycle_input_b,
        loss_f_weight_value, prob_fea_b, prob_fake_a_aux)
    # tolerance covers the approx (EUP) reciprocal in the softmax denominator
    assert jnp.allclose(loss, ref, rtol=5e-3, atol=5e-3), (float(loss), float(ref))

    print("KERNEL_OK")
</pallas_src>

<mosaic_0001>
module attributes {stable_mosaic.version = 11 : i64} {
  func.func @_seg_stats_kernel(%arg0: i32, %arg1: i32, %arg2: memref<1x1x2x128xi32, #tpu.memory_space<vmem>>, %arg3: memref<1x4x2x128xf32, #tpu.memory_space<vmem>>, %arg4: memref<1x1x4x4x128xf32, #tpu.memory_space<vmem>>) attributes {dimension_semantics = [#tpu.dimension_semantics<parallel>, #tpu.dimension_semantics<parallel>], iteration_bounds = array<i64: 2, 1>, scalar_prefetch = 0 : i64, scratch_operands = 0 : i64, tpu.core_type = #tpu.core_type<tc>, window_params = [{transform_indices = @transform_0, window_bounds = array<i64: 1, 1, 2, 128>}, {transform_indices = @transform_1, window_bounds = array<i64: 1, 4, 2, 128>}, {transform_indices = @transform_2, window_bounds = array<i64: 1, 1, 4, 4, 128>}]} {
    %c0 = arith.constant 0 : index
    %c0_0 = arith.constant 0 : index
    %c0_1 = arith.constant 0 : index
    %c0_2 = arith.constant 0 : index
    %0 = vector.load %arg2[%c0, %c0_0, %c0_1, %c0_2] : memref<1x1x2x128xi32, #tpu.memory_space<vmem>>, vector<1x1x2x128xi32>
    %1 = vector.shape_cast %0 : vector<1x1x2x128xi32> to vector<2x128xi32>
    %c0_3 = arith.constant 0 : index
    %c0_4 = arith.constant 0 : index
    %c0_5 = arith.constant 0 : index
    %c0_6 = arith.constant 0 : index
    %2 = vector.load %arg3[%c0_3, %c0_4, %c0_5, %c0_6] : memref<1x4x2x128xf32, #tpu.memory_space<vmem>>, vector<1x1x2x128xf32>
    %3 = vector.shape_cast %2 : vector<1x1x2x128xf32> to vector<2x128xf32>
    %c0_7 = arith.constant 0 : index
    %c1 = arith.constant 1 : index
    %c0_8 = arith.constant 0 : index
    %c0_9 = arith.constant 0 : index
    %4 = vector.load %arg3[%c0_7, %c1, %c0_8, %c0_9] : memref<1x4x2x128xf32, #tpu.memory_space<vmem>>, vector<1x1x2x128xf32>
    %5 = vector.shape_cast %4 : vector<1x1x2x128xf32> to vector<2x128xf32>
    %c0_10 = arith.constant 0 : index
    %c2 = arith.constant 2 : index
    %c0_11 = arith.constant 0 : index
    %c0_12 = arith.constant 0 : index
    %6 = vector.load %arg3[%c0_10, %c2, %c0_11, %c0_12] : memref<1x4x2x128xf32, #tpu.memory_space<vmem>>, vector<1x1x2x128xf32>
    %7 = vector.shape_cast %6 : vector<1x1x2x128xf32> to vector<2x128xf32>
    %c0_13 = arith.constant 0 : index
    %c3 = arith.constant 3 : index
    %c0_14 = arith.constant 0 : index
    %c0_15 = arith.constant 0 : index
    %8 = vector.load %arg3[%c0_13, %c3, %c0_14, %c0_15] : memref<1x4x2x128xf32, #tpu.memory_space<vmem>>, vector<1x1x2x128xf32>
    %9 = vector.shape_cast %8 : vector<1x1x2x128xf32> to vector<2x128xf32>
    %10 = arith.maximumf %3, %5 : vector<2x128xf32>
    %11 = arith.maximumf %10, %7 : vector<2x128xf32>
    %12 = arith.maximumf %11, %9 : vector<2x128xf32>
    %13 = arith.subf %3, %12 : vector<2x128xf32>
    %14 = arith.subf %5, %12 : vector<2x128xf32>
    %15 = arith.subf %7, %12 : vector<2x128xf32>
    %16 = arith.subf %9, %12 : vector<2x128xf32>
    %17 = math.exp %13 : vector<2x128xf32>
    %18 = math.exp %14 : vector<2x128xf32>
    %19 = math.exp %15 : vector<2x128xf32>
    %20 = math.exp %16 : vector<2x128xf32>
    %21 = arith.addf %17, %18 : vector<2x128xf32>
    %22 = arith.addf %21, %19 : vector<2x128xf32>
    %23 = arith.addf %22, %20 : vector<2x128xf32>
    %24 = tpu.reciprocal %23 {approx = true} : vector<2x128xf32> -> vector<2x128xf32>
    %25 = math.log %23 : vector<2x128xf32>
    %cst = arith.constant 0.000000e+00 : f32
    %26 = vector.broadcast %cst : f32 to vector<2x128xf32>
    %cst_16 = arith.constant 1.000000e+00 : f32
    %27 = vector.broadcast %cst_16 : f32 to vector<2x128xf32>
    %28 = arith.mulf %17, %24 : vector<2x128xf32>
    %29 = arith.subf %13, %25 : vector<2x128xf32>
    %cst_17 = arith.constant -5.29831743 : f32
    %30 = vector.broadcast %cst_17 : f32 to vector<2x128xf32>
    %31 = arith.maximumf %29, %30 : vector<2x128xf32>
    %c0_i32 = arith.constant 0 : i32
    %32 = vector.broadcast %c0_i32 : i32 to vector<2x128xi32>
    %33 = arith.cmpi eq, %1, %32 : vector<2x128xi32>
    %34 = arith.select %33, %28, %26 : vector<2x128xi1>, vector<2x128xf32>
    %cst_18 = arith.constant dense<0.000000e+00> : vector<128xf32>
    %35 = vector.multi_reduction <add>, %34, %cst_18 [0] : vector<2x128xf32> to vector<128xf32>
    %36 = vector.shape_cast %35 : vector<128xf32> to vector<1x128xf32>
    %37 = arith.select %33, %27, %26 : vector<2x128xi1>, vector<2x128xf32>
    %cst_19 = arith.constant dense<0.000000e+00> : vector<128xf32>
    %38 = vector.multi_reduction <add>, %37, %cst_19 [0] : vector<2x128xf32> to vector<128xf32>
    %39 = vector.shape_cast %38 : vector<128xf32> to vector<1x128xf32>
    %cst_20 = arith.constant dense<0.000000e+00> : vector<128xf32>
    %40 = vector.multi_reduction <add>, %28, %cst_20 [0] : vector<2x128xf32> to vector<128xf32>
    %41 = vector.shape_cast %40 : vector<128xf32> to vector<1x128xf32>
    %42 = arith.select %33, %31, %26 : vector<2x128xi1>, vector<2x128xf32>
    %cst_21 = arith.constant dense<0.000000e+00> : vector<128xf32>
    %43 = vector.multi_reduction <add>, %42, %cst_21 [0] : vector<2x128xf32> to vector<128xf32>
    %44 = vector.shape_cast %43 : vector<128xf32> to vector<1x128xf32>
    %45 = tpu.concatenate %36, %39, %41, %44 in 0 : vector<1x128xf32>, vector<1x128xf32>, vector<1x128xf32>, vector<1x128xf32> -> vector<4x128xf32>
    %c0_22 = arith.constant 0 : index
    %c0_23 = arith.constant 0 : index
    %c0_24 = arith.constant 0 : index
    %c0_25 = arith.constant 0 : index
    %c0_26 = arith.constant 0 : index
    %46 = vector.load %arg4[%c0_22, %c0_23, %c0_24, %c0_25, %c0_26] : memref<1x1x4x4x128xf32, #tpu.memory_space<vmem>>, vector<1x1x1x4x128xf32>
    %47 = vector.shape_cast %46 : vector<1x1x1x4x128xf32> to vector<4x128xf32>
    %48 = vector.shape_cast %45 : vector<4x128xf32> to vector<1x1x1x4x128xf32>
    tpu.vector_store %arg4[%c0_22, %c0_23, %c0_24, %c0_25, %c0_26], %48 {strides = array<i32>} : memref<1x1x4x4x128xf32, #tpu.memory_space<vmem>>, vector<1x1x1x4x128xf32>,
    %49 = arith.mulf %18, %24 : vector<2x128xf32>
    %50 = arith.subf %14, %25 : vector<2x128xf32>
    %cst_27 = arith.constant -5.29831743 : f32
    %51 = vector.broadcast %cst_27 : f32 to vector<2x128xf32>
    %52 = arith.maximumf %50, %51 : vector<2x128xf32>
    %c1_i32 = arith.constant 1 : i32
    %53 = vector.broadcast %c1_i32 : i32 to vector<2x128xi32>
    %54 = arith.cmpi eq, %1, %53 : vector<2x128xi32>
    %55 = arith.select %54, %49, %26 : vector<2x128xi1>, vector<2x128xf32>
    %cst_28 = arith.constant dense<0.000000e+00> : vector<128xf32>
    %56 = vector.multi_reduction <add>, %55, %cst_28 [0] : vector<2x128xf32> to vector<128xf32>
    %57 = vector.shape_cast %56 : vector<128xf32> to vector<1x128xf32>
    %58 = arith.select %54, %27, %26 : vector<2x128xi1>, vector<2x128xf32>
    %cst_29 = arith.constant dense<0.000000e+00> : vector<128xf32>
    %59 = vector.multi_reduction <add>, %58, %cst_29 [0] : vector<2x128xf32> to vector<128xf32>
    %60 = vector.shape_cast %59 : vector<128xf32> to vector<1x128xf32>
    %cst_30 = arith.constant dense<0.000000e+00> : vector<128xf32>
    %61 = vector.multi_reduction <add>, %49, %cst_30 [0] : vector<2x128xf32> to vector<128xf32>
    %62 = vector.shape_cast %61 : vector<128xf32> to vector<1x128xf32>
    %63 = arith.select %54, %52, %26 : vector<2x128xi1>, vector<2x128xf32>
    %cst_31 = arith.constant dense<0.000000e+00> : vector<128xf32>
    %64 = vector.multi_reduction <add>, %63, %cst_31 [0] : vector<2x128xf32> to vector<128xf32>
    %65 = vector.shape_cast %64 : vector<128xf32> to vector<1x128xf32>
    %66 = tpu.concatenate %57, %60, %62, %65 in 0 : vector<1x128xf32>, vector<1x128xf32>, vector<1x128xf32>, vector<1x128xf32> -> vector<4x128xf32>
    %c0_32 = arith.constant 0 : index
    %c0_33 = arith.constant 0 : index
    %c1_34 = arith.constant 1 : index
    %c0_35 = arith.constant 0 : index
    %c0_36 = arith.constant 0 : index
    %67 = vector.load %arg4[%c0_32, %c0_33, %c1_34, %c0_35, %c0_36] : memref<1x1x4x4x128xf32, #tpu.memory_space<vmem>>, vector<1x1x1x4x128xf32>
    %68 = vector.shape_cast %67 : vector<1x1x1x4x128xf32> to vector<4x128xf32>
    %69 = vector.shape_cast %66 : vector<4x128xf32> to vector<1x1x1x4x128xf32>
    tpu.vector_store %arg4[%c0_32, %c0_33, %c1_34, %c0_35, %c0_36], %69 {strides = array<i32>} : memref<1x1x4x4x128xf32, #tpu.memory_space<vmem>>, vector<1x1x1x4x128xf32>,
    %70 = arith.mulf %19, %24 : vector<2x128xf32>
    %71 = arith.subf %15, %25 : vector<2x128xf32>
    %cst_37 = arith.constant -5.29831743 : f32
    %72 = vector.broadcast %cst_37 : f32 to vector<2x128xf32>
    %73 = arith.maximumf %71, %72 : vector<2x128xf32>
    %c2_i32 = arith.constant 2 : i32
    %74 = vector.broadcast %c2_i32 : i32 to vector<2x128xi32>
    %75 = arith.cmpi eq, %1, %74 : vector<2x128xi32>
    %76 = arith.select %75, %70, %26 : vector<2x128xi1>, vector<2x128xf32>
    %cst_38 = arith.constant dense<0.000000e+00> : vector<128xf32>
    %77 = vector.multi_reduction <add>, %76, %cst_38 [0] : vector<2x128xf32> to vector<128xf32>
    %78 = vector.shape_cast %77 : vector<128xf32> to vector<1x128xf32>
    %79 = arith.select %75, %27, %26 : vector<2x128xi1>, vector<2x128xf32>
    %cst_39 = arith.constant dense<0.000000e+00> : vector<128xf32>
    %80 = vector.multi_reduction <add>, %79, %cst_39 [0] : vector<2x128xf32> to vector<128xf32>
    %81 = vector.shape_cast %80 : vector<128xf32> to vector<1x128xf32>
    %cst_40 = arith.constant dense<0.000000e+00> : vector<128xf32>
    %82 = vector.multi_reduction <add>, %70, %cst_40 [0] : vector<2x128xf32> to vector<128xf32>
    %83 = vector.shape_cast %82 : vector<128xf32> to vector<1x128xf32>
    %84 = arith.select %75, %73, %26 : vector<2x128xi1>, vector<2x128xf32>
    %cst_41 = arith.constant dense<0.000000e+00> : vector<128xf32>
    %85 = vector.multi_reduction <add>, %84, %cst_41 [0] : vector<2x128xf32> to vector<128xf32>
    %86 = vector.shape_cast %85 : vector<128xf32> to vector<1x128xf32>
    %87 = tpu.concatenate %78, %81, %83, %86 in 0 : vector<1x128xf32>, vector<1x128xf32>, vector<1x128xf32>, vector<1x128xf32> -> vector<4x128xf32>
    %c0_42 = arith.constant 0 : index
    %c0_43 = arith.constant 0 : index
    %c2_44 = arith.constant 2 : index
    %c0_45 = arith.constant 0 : index
    %c0_46 = arith.constant 0 : index
    %88 = vector.load %arg4[%c0_42, %c0_43, %c2_44, %c0_45, %c0_46] : memref<1x1x4x4x128xf32, #tpu.memory_space<vmem>>, vector<1x1x1x4x128xf32>
    %89 = vector.shape_cast %88 : vector<1x1x1x4x128xf32> to vector<4x128xf32>
    %90 = vector.shape_cast %87 : vector<4x128xf32> to vector<1x1x1x4x128xf32>
    tpu.vector_store %arg4[%c0_42, %c0_43, %c2_44, %c0_45, %c0_46], %90 {strides = array<i32>} : memref<1x1x4x4x128xf32, #tpu.memory_space<vmem>>, vector<1x1x1x4x128xf32>,
    %91 = arith.mulf %20, %24 : vector<2x128xf32>
    %92 = arith.subf %16, %25 : vector<2x128xf32>
    %cst_47 = arith.constant -5.29831743 : f32
    %93 = vector.broadcast %cst_47 : f32 to vector<2x128xf32>
    %94 = arith.maximumf %92, %93 : vector<2x128xf32>
    %c3_i32 = arith.constant 3 : i32
    %95 = vector.broadcast %c3_i32 : i32 to vector<2x128xi32>
    %96 = arith.cmpi eq, %1, %95 : vector<2x128xi32>
    %97 = arith.select %96, %91, %26 : vector<2x128xi1>, vector<2x128xf32>
    %cst_48 = arith.constant dense<0.000000e+00> : vector<128xf32>
    %98 = vector.multi_reduction <add>, %97, %cst_48 [0] : vector<2x128xf32> to vector<128xf32>
    %99 = vector.shape_cast %98 : vector<128xf32> to vector<1x128xf32>
    %100 = arith.select %96, %27, %26 : vector<2x128xi1>, vector<2x128xf32>
    %cst_49 = arith.constant dense<0.000000e+00> : vector<128xf32>
    %101 = vector.multi_reduction <add>, %100, %cst_49 [0] : vector<2x128xf32> to vector<128xf32>
    %102 = vector.shape_cast %101 : vector<128xf32> to vector<1x128xf32>
    %cst_50 = arith.constant dense<0.000000e+00> : vector<128xf32>
    %103 = vector.multi_reduction <add>, %91, %cst_50 [0] : vector<2x128xf32> to vector<128xf32>
    %104 = vector.shape_cast %103 : vector<128xf32> to vector<1x128xf32>
    %105 = arith.select %96, %94, %26 : vector<2x128xi1>, vector<2x128xf32>
    %cst_51 = arith.constant dense<0.000000e+00> : vector<128xf32>
    %106 = vector.multi_reduction <add>, %105, %cst_51 [0] : vector<2x128xf32> to vector<128xf32>
    %107 = vector.shape_cast %106 : vector<128xf32> to vector<1x128xf32>
    %108 = tpu.concatenate %99, %102, %104, %107 in 0 : vector<1x128xf32>, vector<1x128xf32>, vector<1x128xf32>, vector<1x128xf32> -> vector<4x128xf32>
    %c0_52 = arith.constant 0 : index
    %c0_53 = arith.constant 0 : index
    %c3_54 = arith.constant 3 : index
    %c0_55 = arith.constant 0 : index
    %c0_56 = arith.constant 0 : index
    %109 = vector.load %arg4[%c0_52, %c0_53, %c3_54, %c0_55, %c0_56] : memref<1x1x4x4x128xf32, #tpu.memory_space<vmem>>, vector<1x1x1x4x128xf32>
    %110 = vector.shape_cast %109 : vector<1x1x1x4x128xf32> to vector<4x128xf32>
    %111 = vector.shape_cast %108 : vector<4x128xf32> to vector<1x1x1x4x128xf32>
    tpu.vector_store %arg4[%c0_52, %c0_53, %c3_54, %c0_55, %c0_56], %111 {strides = array<i32>} : memref<1x1x4x4x128xf32, #tpu.memory_space<vmem>>, vector<1x1x1x4x128xf32>,
    return
  }
  func.func @transform_0(%arg0: i32, %arg1: i32) -> (i32, i32, i32, i32) {
    %c0_i32 = arith.constant 0 : i32
    %c0_i32_0 = arith.constant 0 : i32
    %c0_i32_1 = arith.constant 0 : i32
    return %arg0, %c0_i32, %arg1, %c0_i32_0 : i32, i32, i32, i32
  }
  func.func @transform_1(%arg0: i32, %arg1: i32) -> (i32, i32, i32, i32) {
    %c0_i32 = arith.constant 0 : i32
    %c0_i32_0 = arith.constant 0 : i32
    %c0_i32_1 = arith.constant 0 : i32
    return %arg0, %c0_i32, %arg1, %c0_i32_0 : i32, i32, i32, i32
  }
  func.func @transform_2(%arg0: i32, %arg1: i32) -> (i32, i32, i32, i32, i32) {
    %c0_i32 = arith.constant 0 : i32
    %c0_i32_0 = arith.constant 0 : i32
    %c0_i32_1 = arith.constant 0 : i32
    %c0_i32_2 = arith.constant 0 : i32
    return %arg0, %arg1, %c0_i32, %c0_i32_0, %c0_i32_1 : i32, i32, i32, i32, i32
  }
}

</mosaic_0001>

<llo_original>
// kernel: tpu_custom_call.1
$region0: #{tpu_custom_call.1}
  #allocation0 [shape = 'u32[]', space=smem, size = 0x4, offset = 0x4, fixed_abs, tag = 'smem constant byte address 0x4 - core index']
  #allocation1 [shape = 'u32[144,128]{1,0:T(1,128)}', space=vmem, size = 0x12000, scoped, tag = 'internal scratch']
  %s0 = inlined_call_operand.hbm [shape: s32[2,1,2,128], index: 0, kind: input, shape index: {}]
  %s1 = inlined_call_operand.hbm [shape: f32[2,4,2,128], index: 1, kind: input, shape index: {}]
  %s2 = inlined_call_operand.hbm [shape: f32[2,1,4,4,128], index: 2, kind: output, shape index: {}]
  %s3 = sld [smem:[#allocation0]]
  $region49: #{tpu_custom_call.1} parent=0
    _
  %s5 = ssub.s32 1, %s3
  %s6 = scalar_select 0, %s5, %s3
  $region1: #{tpu_custom_call.1} parent=0
    #allocation2 [shape = 'u8[2048]{0}', space=vmem, size = 0x800, scoped, tag = 'input window, operand 0']
    #allocation3 [shape = 's32[2]{0}', space=sflag, size = 0x8, scoped, tag = 'scoped memory for tpu_custom_call.1']
    #allocation4 [shape = 's32[2]{0}', space=sflag, size = 0x8, scoped, tag = 'scoped memory for tpu_custom_call.1']
    #allocation5 [shape = 'u8[8192]{0}', space=vmem, size = 0x2000, scoped, tag = 'input window, operand 1']
    #allocation6 [shape = 's32[2]{0}', space=sflag, size = 0x8, scoped, tag = 'scoped memory for tpu_custom_call.1']
    #allocation7 [shape = 'u8[16384]{0}', space=vmem, size = 0x4000, scoped, tag = 'output window, operand 0']
    %7 = vsyncpa [#allocation3], 0
    %s8 = scalar_lea.sflag [#allocation3], 1
    %9 = vsyncpa %s8, 0
    %10 = vsyncpa [#allocation6], 0
    %s11 = scalar_lea.sflag [#allocation6], 1
    %12 = vsyncpa %s11, 0
    %13 = vsyncpa [#allocation4], 0
    %s14 = scalar_lea.sflag [#allocation4], 1
    %15 = vsyncpa %s14, 0
    loop: start=0, step=1, limit=4
    $region2: #{tpu_custom_call.1} parent=1 // loop_pre_header
      _
    $region3: #{tpu_custom_call.1} parent=1 // loop_header
      %s17 = sphi 0, %s21
      %p18 = scmp.ge.s32.totalorder %s17, 4
      %s24 = sphi 0, %s36
      %s25 = sphi 0, %s32
      %s26 = sphi 0, %s24
      %s27 = sphi 0, %s25
      %s28 = sphi 0, %s26
      %s29 = sphi 0, %s27
      %s41 = sphi 0, %s43
      %s44 = sphi 0, %s41
      %s45 = sphi 0, %s44
      %s61 = sphi 0, %s45
      %s69 = sphi 0, %s71
      %s72 = sphi 0, %s69
      %s73 = sphi 0, %s72
      %s89 = sphi 0, %s73
      %s97 = sphi 0, %s99
      %s100 = sphi 0, %s97
      %s101 = sphi 0, %s100
      %s117 = sphi 0, %s101
    $region4: #{tpu_custom_call.1} parent=1 // loop_header_branch
      %20 = sbr.rel (%p18) target = $region8
    $region5: #{tpu_custom_call.1} parent=1 // loop_body
      %s22 = ssub.s32 %s17, 1
      %s23 = ssub.s32 %s17, 2
      %s30 = sadd.s32 1, %s25
      %p31 = scmp.ge.s32.totalorder %s30, 1
      %s32 = scalar_select %p31, 0, %s30
      %s33 = sadd.s32 1, %s24
      %s34 = scalar_select %p31, %s33, %s24
      %p35 = scmp.ge.s32.totalorder %s34, 2
      %s36 = scalar_select %p35, 0, %s34
      %s37 = ssub.s32 %s24, %s36
      %s38 = ssub.s32 %s25, %s32
      %s39 = sor.u32 %s37, %s38
      %p40 = scmp.eq.s32.totalorder %s39, 0
      %s42 = sadd.s32 %s41, 1
      %s43 = scalar_select %p40, %s41, %s42
      %p46 = pneg %p40
      %p47 = scmp.eq.s32.totalorder %s17, 1
      %p48 = por %p46, %p47
      %p49 = scmp.ne.s32.totalorder %s41, %s44
      %p50 = scmp.eq.s32.totalorder %s17, 0
      %p51 = por %p49, %p50
      %p52 = scmp.ne.s32.totalorder %s41, %s44
      %p53 = scmp.eq.s32.totalorder %s22, 1
      %p54 = por %p52, %p53
      %p55 = scmp.ne.s32.totalorder %s44, %s45
      %p56 = scmp.eq.s32.totalorder %s22, 0
      %p57 = por %p55, %p56
      %p58 = scmp.ne.s32.totalorder %s44, %s45
      %p59 = scmp.eq.s32.totalorder %s23, 1
      %p60 = por %p58, %p59
      %p62 = scmp.ne.s32.totalorder %s45, %s61
      %p63 = scmp.eq.s32.totalorder %s23, 0
      %p64 = por %p62, %p63
      %s65 = ssub.s32 %s24, %s36
      %s66 = ssub.s32 %s25, %s32
      %s67 = sor.u32 %s65, %s66
      %p68 = scmp.eq.s32.totalorder %s67, 0
      %s70 = sadd.s32 %s69, 1
      %s71 = scalar_select %p68, %s69, %s70
      %p74 = pneg %p68
      %p75 = scmp.eq.s32.totalorder %s17, 1
      %p76 = por %p74, %p75
      %p77 = scmp.ne.s32.totalorder %s69, %s72
      %p78 = scmp.eq.s32.totalorder %s17, 0
      %p79 = por %p77, %p78
      %p80 = scmp.ne.s32.totalorder %s69, %s72
      %p81 = scmp.eq.s32.totalorder %s22, 1
      %p82 = por %p80, %p81
      %p83 = scmp.ne.s32.totalorder %s72, %s73
      %p84 = scmp.eq.s32.totalorder %s22, 0
      %p85 = por %p83, %p84
      %p86 = scmp.ne.s32.totalorder %s72, %s73
      %p87 = scmp.eq.s32.totalorder %s23, 1
      %p88 = por %p86, %p87
      %p90 = scmp.ne.s32.totalorder %s73, %s89
      %p91 = scmp.eq.s32.totalorder %s23, 0
      %p92 = por %p90, %p91
      %s93 = ssub.s32 %s24, %s36
      %s94 = ssub.s32 %s25, %s32
      %s95 = sor.u32 %s93, %s94
      %p96 = scmp.eq.s32.totalorder %s95, 0
      %s98 = sadd.s32 %s97, 1
      %s99 = scalar_select %p96, %s97, %s98
      %p102 = pneg %p96
      %p103 = scmp.eq.s32.totalorder %s17, 1
      %p104 = por %p102, %p103
      %p105 = scmp.ne.s32.totalorder %s97, %s100
      %p106 = scmp.eq.s32.totalorder %s17, 0
      %p107 = por %p105, %p106
      %p108 = scmp.ne.s32.totalorder %s97, %s100
      %p109 = scmp.eq.s32.totalorder %s22, 1
      %p110 = por %p108, %p109
      %p111 = scmp.ne.s32.totalorder %s100, %s101
      %p112 = scmp.eq.s32.totalorder %s22, 0
      %p113 = por %p111, %p112
      %p114 = scmp.ne.s32.totalorder %s100, %s101
      %p115 = scmp.eq.s32.totalorder %s23, 1
      %p116 = por %p114, %p115
      %p118 = scmp.ne.s32.totalorder %s101, %s117
      %p119 = scmp.eq.s32.totalorder %s23, 0
      %p120 = por %p118, %p119
      %p121 = scmp.le.s32.totalorder 1, %s17
      %p122 = scmp.lt.s32.totalorder %s17, 3
      %p123 = pnand %p121, %p122
      %p124 = pneg %p123
      // Predicated region
      $region9: #{tpu_custom_call.1} parent=5 // pred_check
        _
      $region10: #{tpu_custom_call.1} parent=5 // pred_check_branch
        %126 = sbr.rel (%p123) target = $region12
      $region11: #{tpu_custom_call.1} parent=5 // pred_region
        %s127 = ssub.s32 %s17, 1
      $region12: #{tpu_custom_call.1} parent=5 // pred_fallthru
        _
      %p128 = scmp.lt.s32.totalorder %s17, 2
      // Predicated region
      $region13: #{tpu_custom_call.1} parent=5 // pred_check
        %p129 = pneg %p128
      $region14: #{tpu_custom_call.1} parent=5 // pred_check_branch
        %131 = sbr.rel (%p129) target = $region16
      $region15: #{tpu_custom_call.1} parent=5 // pred_region
        // Predicated region
        $region17: #{tpu_custom_call.1} parent=15 // pred_check
          %p132 = pneg %p51
        $region18: #{tpu_custom_call.1} parent=15 // pred_check_branch
          %134 = sbr.rel (%p132) target = $region20
        $region19: #{tpu_custom_call.1} parent=15 // pred_region
          %s135 = sand.u32 %s41, 1
          %s136 = scalar_lea.sflag [#allocation3], %s135
          %s137 = sand.u32 %s41, 1
          %s138 = smul.addr %s137, 2
          %s139 = scalar_lea.vmem [#allocation2], %s138
          %s141 = ssub.s32 32, 32
          %142 = vsyncadd %s136, %s141
          %s143 = sadd.s32 %s25, %s24
          %s144 = smul.addr %s143, 32
          %s145 = scalar_lea.hbm %s0, %s144
          %s147 = sshll.u32 %s139, 4
          %s148 = int_to_ptr.vmem [resolvable:$true] %s147
          %150 = dma.hbm_to_vmem [thread:$0]  %s145, 32, %s148, %s136
        $region20: #{tpu_custom_call.1} parent=15 // pred_fallthru
          _
        // Predicated region
        $region21: #{tpu_custom_call.1} parent=15 // pred_check
          %p151 = pneg %p79
        $region22: #{tpu_custom_call.1} parent=15 // pred_check_branch
          %153 = sbr.rel (%p151) target = $region24
        $region23: #{tpu_custom_call.1} parent=15 // pred_region
          %s154 = sand.u32 %s69, 1
          %s155 = scalar_lea.sflag [#allocation6], %s154
          %s156 = sand.u32 %s69, 1
          %s157 = smul.addr %s156, 8
          %s158 = scalar_lea.vmem [#allocation5], %s157
          %s160 = ssub.s32 128, 128
          %161 = vsyncadd %s155, %s160
          %s162 = smul.addr %s24, 4
          %s163 = sadd.s32 %s25, %s162
          %s164 = smul.addr %s163, 32
          %s165 = scalar_lea.hbm %s1, %s164
          %s166 = sshll.u32 %s158, 4
          %s167 = int_to_ptr.vmem [resolvable:$true] %s166
          %172 = dma.hbm_to_vmem [thread:$0]  %s165, 128, %s167, %s155, 32, 32, 2
        $region24: #{tpu_custom_call.1} parent=15 // pred_fallthru
          _
      $region16: #{tpu_custom_call.1} parent=5 // pred_fallthru
        _
      %p173 = scmp.le.s32.totalorder 1, %s17
      %p174 = scmp.lt.s32.totalorder %s17, 3
      %p175 = pnand %p173, %p174
      %p176 = pneg %p175
      // Predicated region
      $region25: #{tpu_custom_call.1} parent=5 // pred_check
        _
      $region26: #{tpu_custom_call.1} parent=5 // pred_check_branch
        %178 = sbr.rel (%p175) target = $region28
      $region27: #{tpu_custom_call.1} parent=5 // pred_region
        %s179 = ssub.s32 %s17, 1
        %s180 = sand.u32 %s44, 1
        %s181 = scalar_lea.sflag [#allocation3], %s180
        %s182 = sand.u32 %s44, 1
        %s183 = smul.addr %s182, 2
        %s184 = scalar_lea.vmem [#allocation2], %s183
        // Predicated region
        $region29: #{tpu_custom_call.1} parent=27 // pred_check
          %p185 = pneg %p57
        $region30: #{tpu_custom_call.1} parent=27 // pred_check_branch
          %187 = sbr.rel (%p185) target = $region32
        $region31: #{tpu_custom_call.1} parent=27 // pred_region
          %188 = dma.done %s181, 32
        $region32: #{tpu_custom_call.1} parent=27 // pred_fallthru
          _
        %s189 = sand.u32 %s72, 1
        %s190 = scalar_lea.sflag [#allocation6], %s189
        %s191 = sand.u32 %s72, 1
        %s192 = smul.addr %s191, 8
        %s193 = scalar_lea.vmem [#allocation5], %s192
        // Predicated region
        $region33: #{tpu_custom_call.1} parent=27 // pred_check
          %p194 = pneg %p85
        $region34: #{tpu_custom_call.1} parent=27 // pred_check_branch
          %196 = sbr.rel (%p194) target = $region36
        $region35: #{tpu_custom_call.1} parent=27 // pred_region
          %197 = dma.done %s190, 128
        $region36: #{tpu_custom_call.1} parent=27 // pred_fallthru
          _
        %s198 = sand.u32 %s44, 1
        %s199 = scalar_lea.sflag [#allocation3], %s198
        %s200 = sand.u32 %s44, 1
        %s201 = smul.addr %s200, 2
        %s202 = scalar_lea.vmem [#allocation2], %s201
        %p203 = pneg %p57
        %p204 = pneg %p54
        %s205 = sand.u32 %s72, 1
        %s206 = scalar_lea.sflag [#allocation6], %s205
        %s207 = sand.u32 %s72, 1
        %s208 = smul.addr %s207, 8
        %s209 = scalar_lea.vmem [#allocation5], %s208
        %p210 = pneg %p85
        %p211 = pneg %p82
        %p212 = pneg %p113
        %p213 = pneg %p110
        %s214 = sand.u32 %s100, 1
        %s215 = scalar_lea.sflag [#allocation4], %s214
        %s216 = sand.u32 %s100, 1
        %s217 = smul.addr %s216, 16
        %s218 = scalar_lea.vmem [#allocation7], %s217
        %v219 = vld [vmem:[%s184] sm:$0x3]
        %v220 = vld [vmem:[%s193] sm:$0x3]
        %s221 = scalar_lea.vmem %s193, 2 [#allocation5]
        %v222 = vld [vmem:[%s221] sm:$0x3]
        %s223 = scalar_lea.vmem %s193, 4 [#allocation5]
        %v224 = vld [vmem:[%s223] sm:$0x3]
        %s225 = scalar_lea.vmem %s193, 6 [#allocation5]
        %v226 = vld [vmem:[%s225] sm:$0x3]
        %v227 = vmax.f32 %v220, %v222
        %v228 = vmax.f32 %v227, %v224
        %v229 = vmax.f32 %v228, %v226
        %v230 = vsub.f32 %v220, %v229
        %v231 = vsub.f32 %v222, %v229
        %v232 = vsub.f32 %v224, %v229
        %v233 = vsub.f32 %v226, %v229
        %v234 = vmul.f32 %v230, 1.442695
        %v235 = vpow.pop %v234
        %v236 = vmul.f32 %v231, 1.442695
        %v237 = vpow.pop %v236
        %v238 = vmul.f32 %v232, 1.442695
        %v239 = vpow.pop %v238
        %v240 = vmul.f32 %v233, 1.442695
        %v241 = vpow.pop %v240
        %v242 = vadd.f32 %v235, %v237
        %v243 = vadd.f32 %v242, %v239
        %v244 = vadd.f32 %v243, %v241
        %v245 = vrcp.pop %v244
        %v246 = vlog2.pop %v244
        %v247 = vmul.f32 %v246, 0.6931472
        %v248 = vmul.f32 %v235, %v245
        %v249 = vsub.f32 %v230, %v247
        %v250 = vmax.f32 %v249, -5.2983174
        %vm251 = vcmp.eq.s32.totalorder %v219, 0
        %v252 = vsel %vm251, %v248, 0.0
        %vm253 = vcmask 1041408
        %v254 = vsel %vm253, %v252, 0.0
        %v255 = vrot.slane %v254, 4
        %v256 = vadd.f32 %v254, %v255
        %v257 = vrot.slane %v256, 2
        %v258 = vadd.f32 %v256, %v257
        %v259 = vrot.slane %v258, 1
        %v260 = vadd.f32 %v258, %v259
        %v261 = vsel %vm251, 1.0, 0.0
        %v262 = vsel %vm253, %v261, 0.0
        %v263 = vrot.slane %v262, 4
        %v264 = vadd.f32 %v262, %v263
        %v265 = vrot.slane %v264, 2
        %v266 = vadd.f32 %v264, %v265
        %v267 = vrot.slane %v266, 1
        %v268 = vadd.f32 %v266, %v267
        %v269 = vsel %vm253, %v248, 0.0
        %v270 = vrot.slane %v269, 4
        %v271 = vadd.f32 %v269, %v270
        %v272 = vrot.slane %v271, 2
        %v273 = vadd.f32 %v271, %v272
        %v274 = vrot.slane %v273, 1
        %v275 = vadd.f32 %v273, %v274
        %v276 = vsel %vm251, %v250, 0.0
        %v277 = vsel %vm253, %v276, 0.0
        %v278 = vrot.slane %v277, 4
        %v279 = vadd.f32 %v277, %v278
        %v280 = vrot.slane %v279, 2
        %v281 = vadd.f32 %v279, %v280
        %v282 = vrot.slane %v281, 1
        %v283 = vadd.f32 %v281, %v282
        %vm284 = vcmask 1040384
        %v285 = vsel %vm284, %v260, %v268
        %v286 = vsel %vm253, %v285, %v275
        %vm287 = vcmask 1042432
        %v288 = vsel %vm287, %v286, %v283
        %289 = vst [vmem:[%s218] sm:$0xf] %v288
        %v290 = vmul.f32 %v237, %v245
        %v291 = vsub.f32 %v231, %v247
        %v292 = vmax.f32 %v291, -5.2983174
        %vm293 = vcmp.eq.s32.totalorder %v219, 1
        %v294 = vsel %vm293, %v290, 0.0
        %v295 = vsel %vm253, %v294, 0.0
        %v296 = vrot.slane %v295, 4
        %v297 = vadd.f32 %v295, %v296
        %v298 = vrot.slane %v297, 2
        %v299 = vadd.f32 %v297, %v298
        %v300 = vrot.slane %v299, 1
        %v301 = vadd.f32 %v299, %v300
        %v302 = vsel %vm293, 1.0, 0.0
        %v303 = vsel %vm253, %v302, 0.0
        %v304 = vrot.slane %v303, 4
        %v305 = vadd.f32 %v303, %v304
        %v306 = vrot.slane %v305, 2
        %v307 = vadd.f32 %v305, %v306
        %v308 = vrot.slane %v307, 1
        %v309 = vadd.f32 %v307, %v308
        %v310 = vsel %vm253, %v290, 0.0
        %v311 = vrot.slane %v310, 4
        %v312 = vadd.f32 %v310, %v311
        %v313 = vrot.slane %v312, 2
        %v314 = vadd.f32 %v312, %v313
        %v315 = vrot.slane %v314, 1
        %v316 = vadd.f32 %v314, %v315
        %v317 = vsel %vm293, %v292, 0.0
        %v318 = vsel %vm253, %v317, 0.0
        %v319 = vrot.slane %v318, 4
        %v320 = vadd.f32 %v318, %v319
        %v321 = vrot.slane %v320, 2
        %v322 = vadd.f32 %v320, %v321
        %v323 = vrot.slane %v322, 1
        %v324 = vadd.f32 %v322, %v323
        %v325 = vsel %vm284, %v301, %v309
        %v326 = vsel %vm253, %v325, %v316
        %v327 = vsel %vm287, %v326, %v324
        %s328 = scalar_lea.vmem %s218, 4 [#allocation7]
        %329 = vst [vmem:[%s328] sm:$0xf] %v327
        %v330 = vmul.f32 %v239, %v245
        %v331 = vsub.f32 %v232, %v247
        %v332 = vmax.f32 %v331, -5.2983174
        %vm333 = vcmp.eq.s32.totalorder %v219, 2
        %v334 = vsel %vm333, %v330, 0.0
        %v335 = vsel %vm253, %v334, 0.0
        %v336 = vrot.slane %v335, 4
        %v337 = vadd.f32 %v335, %v336
        %v338 = vrot.slane %v337, 2
        %v339 = vadd.f32 %v337, %v338
        %v340 = vrot.slane %v339, 1
        %v341 = vadd.f32 %v339, %v340
        %v342 = vsel %vm333, 1.0, 0.0
        %v343 = vsel %vm253, %v342, 0.0
        %v344 = vrot.slane %v343, 4
        %v345 = vadd.f32 %v343, %v344
        %v346 = vrot.slane %v345, 2
        %v347 = vadd.f32 %v345, %v346
        %v348 = vrot.slane %v347, 1
        %v349 = vadd.f32 %v347, %v348
        %v350 = vsel %vm253, %v330, 0.0
        %v351 = vrot.slane %v350, 4
        %v352 = vadd.f32 %v350, %v351
        %v353 = vrot.slane %v352, 2
        %v354 = vadd.f32 %v352, %v353
        %v355 = vrot.slane %v354, 1
        %v356 = vadd.f32 %v354, %v355
        %v357 = vsel %vm333, %v332, 0.0
        %v358 = vsel %vm253, %v357, 0.0
        %v359 = vrot.slane %v358, 4
        %v360 = vadd.f32 %v358, %v359
        %v361 = vrot.slane %v360, 2
        %v362 = vadd.f32 %v360, %v361
        %v363 = vrot.slane %v362, 1
        %v364 = vadd.f32 %v362, %v363
        %v365 = vsel %vm284, %v341, %v349
        %v366 = vsel %vm253, %v365, %v356
        %v367 = vsel %vm287, %v366, %v364
        %s368 = scalar_lea.vmem %s218, 8 [#allocation7]
        %369 = vst [vmem:[%s368] sm:$0xf] %v367
        %v370 = vmul.f32 %v241, %v245
        %v371 = vsub.f32 %v233, %v247
        %v372 = vmax.f32 %v371, -5.2983174
        %vm373 = vcmp.eq.s32.totalorder %v219, 3
        %v374 = vsel %vm373, %v370, 0.0
        %v375 = vsel %vm253, %v374, 0.0
        %v376 = vrot.slane %v375, 4
        %v377 = vadd.f32 %v375, %v376
        %v378 = vrot.slane %v377, 2
        %v379 = vadd.f32 %v377, %v378
        %v380 = vrot.slane %v379, 1
        %v381 = vadd.f32 %v379, %v380
        %v382 = vsel %vm373, 1.0, 0.0
        %v383 = vsel %vm253, %v382, 0.0
        %v384 = vrot.slane %v383, 4
        %v385 = vadd.f32 %v383, %v384
        %v386 = vrot.slane %v385, 2
        %v387 = vadd.f32 %v385, %v386
        %v388 = vrot.slane %v387, 1
        %v389 = vadd.f32 %v387, %v388
        %v390 = vsel %vm253, %v370, 0.0
        %v391 = vrot.slane %v390, 4
        %v392 = vadd.f32 %v390, %v391
        %v393 = vrot.slane %v392, 2
        %v394 = vadd.f32 %v392, %v393
        %v395 = vrot.slane %v394, 1
        %v396 = vadd.f32 %v394, %v395
        %v397 = vsel %vm373, %v372, 0.0
        %v398 = vsel %vm253, %v397, 0.0
        %v399 = vrot.slane %v398, 4
        %v400 = vadd.f32 %v398, %v399
        %v401 = vrot.slane %v400, 2
        %v402 = vadd.f32 %v400, %v401
        %v403 = vrot.slane %v402, 1
        %v404 = vadd.f32 %v402, %v403
        %v405 = vsel %vm284, %v381, %v389
        %v406 = vsel %vm253, %v405, %v396
        %v407 = vsel %vm287, %v406, %v404
        %s408 = scalar_lea.vmem %s218, 12 [#allocation7]
        %409 = vst [vmem:[%s408] sm:$0xf] %v407
        %s410 = sand.u32 %s100, 1
        %s411 = scalar_lea.sflag [#allocation4], %s410
        %s412 = sand.u32 %s100, 1
        %s413 = smul.addr %s412, 16
        %s414 = scalar_lea.vmem [#allocation7], %s413
        // Predicated region
        $region37: #{tpu_custom_call.1} parent=27 // pred_check
          %p415 = pneg %p110
        $region38: #{tpu_custom_call.1} parent=27 // pred_check_branch
          %417 = sbr.rel (%p415) target = $region40
        $region39: #{tpu_custom_call.1} parent=27 // pred_region
          %s419 = ssub.s32 256, 256
          %420 = vsyncadd %s411, %s419
          %s421 = smul.addr %s27, 4
          %s422 = smul.addr %s26, 4
          %s423 = sadd.s32 %s421, %s422
          %s424 = smul.addr %s423, 64
          %s425 = scalar_lea.hbm %s2, %s424
          %s426 = sshll.u32 %s414, 4
          %s427 = int_to_ptr.vmem [resolvable:$true] %s426
          %432 = dma.vmem_to_hbm [thread:$0]  %s427, 256, %s425, %s411, 64, 64, 4
        $region40: #{tpu_custom_call.1} parent=27 // pred_fallthru
          _
      $region28: #{tpu_custom_call.1} parent=5 // pred_fallthru
        _
      %p433 = scmp.le.s32.totalorder 2, %s17
      // Predicated region
      $region41: #{tpu_custom_call.1} parent=5 // pred_check
        %p434 = pneg %p433
      $region42: #{tpu_custom_call.1} parent=5 // pred_check_branch
        %436 = sbr.rel (%p434) target = $region44
      $region43: #{tpu_custom_call.1} parent=5 // pred_region
        %s437 = ssub.s32 %s17, 2
        // Predicated region
        $region45: #{tpu_custom_call.1} parent=43 // pred_check
          %p438 = pneg %p116
        $region46: #{tpu_custom_call.1} parent=43 // pred_check_branch
          %440 = sbr.rel (%p438) target = $region48
        $region47: #{tpu_custom_call.1} parent=43 // pred_region
          %s441 = sand.u32 %s101, 1
          %s442 = scalar_lea.sflag [#allocation4], %s441
          %s443 = sand.u32 %s101, 1
          %s444 = smul.addr %s443, 16
          %s445 = scalar_lea.vmem [#allocation7], %s444
          %446 = dma.done %s442, 256
        $region48: #{tpu_custom_call.1} parent=43 // pred_fallthru
          _
      $region44: #{tpu_custom_call.1} parent=5 // pred_fallthru
        _
    $region6: #{tpu_custom_call.1} parent=1 // loop_footer
      %s21 = sadd.s32 1, %s17
    $region7: #{tpu_custom_call.1} parent=1 // loop_footer_branch
      %16 = sbr.rel target = $region3
    $region8: #{tpu_custom_call.1} parent=1 // loop_exit
      _
    %447 = vsyncpa [#allocation3], 1
    %s448 = scalar_lea.sflag [#allocation3], 1
    %449 = vsyncpa %s448, 1
    %450 = vsyncpa [#allocation6], 1
    %s451 = scalar_lea.sflag [#allocation6], 1
    %452 = vsyncpa %s451, 1
    %453 = vsyncpa [#allocation4], 1
    %s454 = scalar_lea.sflag [#allocation4], 1
    %455 = vsyncpa %s454, 1

</llo_original>
